<compile_context>
chip_gen: v7x
topology: tpu7x:2x2x1
jax: 0.10.0
libtpu: 0.0.40
codegen_flags: <defaults>
</compile_context>

<pallas_src>
import functools

import numpy as np
import jax
import jax.numpy as jnp
from jax import lax
from jax.experimental import pallas as pl
from jax.experimental.pallas import tpu as pltpu

C1 = 16     # conv1 output channels (fixed by the module)
C2 = 32     # conv2 output channels (fixed by the module)
KS = 3      # kernel size
STRIDE = 2
PAD = 1


def _conv_out_hw(h, w):
    return (h + 2 * PAD - KS) // STRIDE + 1, (w + 2 * PAD - KS) // STRIDE + 1


# ----------------------------------------------------------------------------
# Fused kernel: conv1+ReLU -> (in-VMEM im2col) conv2+ReLU -> flatten -> linear
# ----------------------------------------------------------------------------
def _fused_cnn_kernel(xcol_ref, w1_ref, b1_ref, w2_ref, b2_ref, wl_ref, bl_ref,
                      o_ref, *, batch, oh, ow):
    f32 = jnp.float32
    bf16 = jnp.bfloat16
    hw2 = oh * ow
    m2 = batch * hw2              # conv2 output rows == rows per conv1 phase block
    c2 = w2_ref.shape[1]

    # ---- conv1: one packed matmul over K = 9*Cin ----------------------------
    h1 = jnp.dot(xcol_ref[...], w1_ref[...], preferred_element_type=f32)
    h1 = jnp.maximum(h1 + b1_ref[...], 0.0).astype(bf16)         # (4*m2, C1)

    # h1 rows are phase-major by the parity of conv1's output coords,
    # each block ordered (b, Y, X):
    #   [0:m2]=ee (oy even, ox even)  [m2:2m2]=eo  [2m2:3m2]=oe  [3m2:4m2]=oo
    ee = h1[0 * m2:1 * m2, :]
    eo = h1[1 * m2:2 * m2, :]
    oe = h1[2 * m2:3 * m2, :]
    oo = h1[3 * m2:4 * m2, :]

    # Boundary masks over conv2's output rows r = b*hw2 + Y*ow + X.
    row = lax.broadcasted_iota(jnp.int32, (m2, 1), 0)
    at_x0 = (row % ow) == 0          # X == 0  -> left zero padding
    at_y0 = (row % hw2) < ow         # Y == 0  -> top  zero padding

    def shifted(block, s, mask):
        # out[r] = block[r - s] (zero-filled at the top), then zero the rows
        # that hit conv2's zero padding.  Pure slice/concat/select — no MXU,
        # no gathers, no strided loads.
        top = jnp.zeros((s, block.shape[1]), block.dtype)
        sh = jnp.concatenate([top, block[:block.shape[0] - s, :]], axis=0)
        return jnp.where(mask, jnp.zeros_like(block), sh)

    # In-kernel im2col for conv2 (3x3, stride 2, pad 1), tap order t = ki*3+kj.
    taps = (
        shifted(oo, ow + 1, at_x0 | at_y0),   # (0,0): (2Y-1, 2X-1)
        shifted(oe, ow,     at_y0),           # (0,1): (2Y-1, 2X  )
        shifted(oo, ow,     at_y0),           # (0,2): (2Y-1, 2X+1)
        shifted(eo, 1,      at_x0),           # (1,0): (2Y  , 2X-1)
        ee,                                   # (1,1): (2Y  , 2X  )
        eo,                                   # (1,2): (2Y  , 2X+1)
        shifted(oo, 1,      at_x0),           # (2,0): (2Y+1, 2X-1)
        oe,                                   # (2,1): (2Y+1, 2X  )
        oo,                                   # (2,2): (2Y+1, 2X+1)
    )
    x2col = jnp.concatenate(taps, axis=1)                        # (m2, 9*C1)

    # ---- conv2: one packed matmul over K = 9*C1 -----------------------------
    h2 = jnp.dot(x2col, w2_ref[...], preferred_element_type=f32)
    h2 = jnp.maximum(h2 + b2_ref[...], 0.0).astype(bf16)         # (m2, C2)

    # ---- Flatten (PyTorch NCHW order folded into wlp) + Linear --------------
    h2b = h2.reshape(batch, hw2, c2)
    h2_flat = jnp.concatenate([h2b[:, p, :] for p in range(hw2)], axis=1)
    out = jnp.dot(h2_flat, wl_ref[...], preferred_element_type=f32)
    o_ref[...] = (out + bl_ref[...]).astype(o_ref.dtype)


# ----------------------------------------------------------------------------
# Per-forward host glue: layout-only im2col of the network input for conv1,
# rows ordered phase-major so the kernel's conv2 im2col is row-block slicing.
# ----------------------------------------------------------------------------
def _im2col_conv1_phase_major(x_nchw):
    b, c, h, w = x_nchw.shape
    h1, w1 = _conv_out_hw(h, w)
    assert h1 % 2 == 0 and w1 % 2 == 0, "conv1 output spatial dims must be even"
    xt = jnp.transpose(x_nchw, (0, 2, 3, 1))                     # (B,H,W,C)
    xp = jnp.pad(xt, ((0, 0), (PAD, PAD), (PAD, PAD), (0, 0)))
    taps = [xp[:, ki:ki + STRIDE * h1:STRIDE, kj:kj + STRIDE * w1:STRIDE, :]
            for ki in range(KS) for kj in range(KS)]             # 9 x (B,H1,W1,C)
    xcol = jnp.concatenate(taps, axis=-1)                        # (B,H1,W1,9C)
    xcol = xcol.reshape(b, h1 // 2, 2, w1 // 2, 2, KS * KS * c)
    xcol = jnp.transpose(xcol, (2, 4, 0, 1, 3, 5))               # (py,px,B,Y,X,9C)
    return xcol.reshape(4 * b * (h1 // 2) * (w1 // 2),
                        KS * KS * c).astype(jnp.bfloat16)


# ----------------------------------------------------------------------------
# One-time (init) construction of packed kernel constants (batch independent)
# ----------------------------------------------------------------------------
def build_kernel_constants(params):
    w1 = np.asarray(params["w1"], np.float32)        # (C1, Cin, 3, 3)
    w2 = np.asarray(params["w2"], np.float32)        # (C2, C1, 3, 3)
    wl = np.asarray(params["wl"], np.float32)        # (C2*H2*W2, F)
    nfl, feat = wl.shape
    hw2 = nfl // C2

    # conv weights: (Cout, Cin, kh, kw) -> (kh*kw*Cin, Cout), tap-major rows.
    w1p = np.transpose(w1, (2, 3, 1, 0)).reshape(KS * KS * w1.shape[1], C1)
    w2p = np.transpose(w2, (2, 3, 1, 0)).reshape(KS * KS * C1, C2)

    # linear weight: fold PyTorch NCHW flatten (row c*hw2 + p) into the
    # channel-minor packed layout (row p*C2 + c) that matches h2_flat.
    wlp = np.transpose(wl.reshape(C2, hw2, feat), (1, 0, 2)).reshape(hw2 * C2, feat)

    bf16 = jnp.bfloat16
    return {
        "w1": jnp.asarray(w1p, bf16),
        "b1": jnp.asarray(params["b1"], jnp.float32).reshape(1, C1),
        "w2": jnp.asarray(w2p, bf16),
        "b2": jnp.asarray(params["b2"], jnp.float32).reshape(1, C2),
        "wl": jnp.asarray(wlp, bf16),
        "bl": jnp.asarray(params["bl"], jnp.float32).reshape(1, feat),
    }


# ----------------------------------------------------------------------------
# Forward pass: one pallas_call, everything VMEM resident (no double-buffering)
# ----------------------------------------------------------------------------
def custom_cnn_forward(x_nchw, consts):
    b, c, h, w = x_nchw.shape
    h1, w1 = _conv_out_hw(h, w)
    h2, w2 = _conv_out_hw(h1, w1)
    feat = consts["wl"].shape[1]
    assert consts["w1"].shape[0] == KS * KS * c, "input channel count mismatch"
    assert consts["wl"].shape[0] == C2 * h2 * w2, \
        "spatial dims differ from those the Linear layer was built for"

    xcol = _im2col_conv1_phase_major(x_nchw)

    kernel = functools.partial(_fused_cnn_kernel, batch=b, oh=h2, ow=w2)
    operands = (xcol, consts["w1"], consts["b1"], consts["w2"], consts["b2"],
                consts["wl"], consts["bl"])
    # For large batch: make batch a "parallel" grid axis (constants are batch
    # independent now) to shard across v7x's two TensorCores; at B=2 the call
    # is overhead/DMA-bound and a single invocation is optimal.
    return pl.pallas_call(
        kernel,
        out_shape=jax.ShapeDtypeStruct((b, feat), jnp.float32),
        in_specs=[pl.BlockSpec(memory_space=pltpu.MemorySpace.VMEM)
                  for _ in operands],
        out_specs=pl.BlockSpec(memory_space=pltpu.MemorySpace.VMEM),
    )(*operands)


# ----------------------------------------------------------------------------
# Params (PyTorch layout) and a plain-JAX reference for the sanity check
# ----------------------------------------------------------------------------
def init_params(key, n_input_channels, hw, features_dim=256):
    h, w = hw
    h1, w1 = _conv_out_hw(h, w)
    h2, w2 = _conv_out_hw(h1, w1)
    n_flatten = C2 * h2 * w2
    k1, k2, k3, k4, k5, k6 = jax.random.split(key, 6)
    return {
        "w1": jax.random.normal(k1, (C1, n_input_channels, 3, 3), jnp.float32) * 0.1,
        "b1": jax.random.normal(k2, (C1,), jnp.float32) * 0.1,
        "w2": jax.random.normal(k3, (C2, C1, 3, 3), jnp.float32) * 0.1,
        "b2": jax.random.normal(k4, (C2,), jnp.float32) * 0.1,
        "wl": jax.random.normal(k5, (n_flatten, features_dim), jnp.float32) * 0.05,
        "bl": jax.random.normal(k6, (features_dim,), jnp.float32) * 0.05,
    }


def reference_forward(x, params):
    dn = ("NCHW", "OIHW", "NCHW")
    y = lax.conv_general_dilated(x, params["w1"], (2, 2), ((1, 1), (1, 1)),
                                 dimension_numbers=dn)
    y = jnp.maximum(y + params["b1"][None, :, None, None], 0.0)
    y = lax.conv_general_dilated(y, params["w2"], (2, 2), ((1, 1), (1, 1)),
                                 dimension_numbers=dn)
    y = jnp.maximum(y + params["b2"][None, :, None, None], 0.0)
    flat = y.reshape(y.shape[0], -1)                 # NCHW flatten, like torch
    return flat @ params["wl"] + params["bl"]


if __name__ == "__main__":
    key = jax.random.PRNGKey(0)
    kx, kp = jax.random.split(key)

    B, C, H, W = 2, 4, 16, 16
    x = jax.random.normal(kx, (B, C, H, W), jnp.float32)
    params = init_params(kp, n_input_channels=C, hw=(H, W), features_dim=256)

    # One-time weight packing (tap-major conv weights, permuted linear weight).
    consts = build_kernel_constants(params)

    fwd = jax.jit(custom_cnn_forward)
    out = jax.block_until_ready(fwd(x, consts))
    assert out.shape == (B, 256), out.shape

    # Numerical sanity check against a plain-JAX reference (bf16 MXU operands
    # in the kernel -> loose tolerance).
    ref = jax.block_until_ready(reference_forward(x, params))
    max_err = float(jnp.max(jnp.abs(out - ref)))
    assert max_err < 1e-1, f"kernel deviates from reference: {max_err}"

    print("KERNEL_OK")
</pallas_src>

<mosaic_0001>
module attributes {stable_mosaic.version = 11 : i64} {
  func.func @_fused_cnn_kernel(%arg0: memref<128x36xbf16, #tpu.memory_space<vmem>>, %arg1: memref<36x16xbf16, #tpu.memory_space<vmem>>, %arg2: memref<1x16xf32, #tpu.memory_space<vmem>>, %arg3: memref<144x32xbf16, #tpu.memory_space<vmem>>, %arg4: memref<1x32xf32, #tpu.memory_space<vmem>>, %arg5: memref<512x256xbf16, #tpu.memory_space<vmem>>, %arg6: memref<1x256xf32, #tpu.memory_space<vmem>>, %arg7: memref<2x256xf32, #tpu.memory_space<vmem>>) attributes {dimension_semantics = [], scalar_prefetch = 0 : i64, scratch_operands = 0 : i64, tpu.core_type = #tpu.core_type<tc>} {
    %c0 = arith.constant 0 : index
    %c0_0 = arith.constant 0 : index
    %0 = vector.load %arg0[%c0, %c0_0] : memref<128x36xbf16, #tpu.memory_space<vmem>>, vector<128x36xbf16>
    %c0_1 = arith.constant 0 : index
    %c0_2 = arith.constant 0 : index
    %1 = vector.load %arg1[%c0_1, %c0_2] : memref<36x16xbf16, #tpu.memory_space<vmem>>, vector<36x16xbf16>
    %cst = arith.constant dense<0.000000e+00> : vector<128x16xf32>
    %2 = tpu.matmul %0, %1, %cst {dimension_numbers = #tpu.dot_dimension_numbers<[1], [0], [0], [1], [0, 0, 1, 1], [], []>} : vector<128x36xbf16>, vector<36x16xbf16>, vector<128x16xf32> -> vector<128x16xf32>
    %c0_3 = arith.constant 0 : index
    %c0_4 = arith.constant 0 : index
    %3 = vector.load %arg2[%c0_3, %c0_4] : memref<1x16xf32, #tpu.memory_space<vmem>>, vector<1x16xf32>
    %4 = vector.broadcast %3 : vector<1x16xf32> to vector<128x16xf32>
    %5 = arith.addf %2, %4 : vector<128x16xf32>
    %cst_5 = arith.constant 0.000000e+00 : f32
    %6 = vector.broadcast %cst_5 : f32 to vector<128x16xf32>
    %7 = arith.maximumf %5, %6 : vector<128x16xf32>
    %8 = arith.truncf %7 : vector<128x16xf32> to vector<128x16xbf16>
    %9 = vector.extract_strided_slice %8 {offsets = [0, 0], sizes = [32, 16], strides = [1, 1]} : vector<128x16xbf16> to vector<32x16xbf16>
    %10 = vector.extract_strided_slice %8 {offsets = [32, 0], sizes = [32, 16], strides = [1, 1]} : vector<128x16xbf16> to vector<32x16xbf16>
    %11 = vector.extract_strided_slice %8 {offsets = [64, 0], sizes = [32, 16], strides = [1, 1]} : vector<128x16xbf16> to vector<32x16xbf16>
    %12 = vector.extract_strided_slice %8 {offsets = [96, 0], sizes = [32, 16], strides = [1, 1]} : vector<128x16xbf16> to vector<32x16xbf16>
    %13 = tpu.iota {dimensions = array<i32: 0>} : vector<32x1xi32>
    %c4_i32 = arith.constant 4 : i32
    %c0_i32 = arith.constant 0 : i32
    %14 = arith.cmpi eq, %c4_i32, %c0_i32 : i32
    %c1_i32 = arith.constant 1 : i32
    %15 = arith.select %14, %c1_i32, %c4_i32 : i32
    %16 = vector.broadcast %15 : i32 to vector<32x1xi32>
    %17 = arith.remsi %13, %16 : vector<32x1xi32>
    %c0_i32_6 = arith.constant 0 : i32
    %18 = vector.broadcast %c0_i32_6 : i32 to vector<32x1xi32>
    %19 = arith.cmpi ne, %17, %18 : vector<32x1xi32>
    %c0_i32_7 = arith.constant 0 : i32
    %20 = vector.broadcast %c0_i32_7 : i32 to vector<32x1xi32>
    %21 = arith.cmpi slt, %17, %20 : vector<32x1xi32>
    %c0_i32_8 = arith.constant 0 : i32
    %22 = arith.cmpi slt, %15, %c0_i32_8 : i32
    %23 = vector.broadcast %22 : i1 to vector<32x1xi1>
    %24 = vector.broadcast %23 : vector<32x1xi1> to vector<32x1xi1>
    %25 = arith.xori %21, %24 : vector<32x1xi1>
    %26 = arith.andi %25, %19 : vector<32x1xi1>
    %27 = vector.broadcast %15 : i32 to vector<32x1xi32>
    %28 = arith.addi %17, %27 : vector<32x1xi32>
    %29 = arith.select %26, %28, %17 : vector<32x1xi1>, vector<32x1xi32>
    %c0_i32_9 = arith.constant 0 : i32
    %30 = vector.broadcast %c0_i32_9 : i32 to vector<32x1xi32>
    %31 = arith.cmpi eq, %29, %30 : vector<32x1xi32>
    %c16_i32 = arith.constant 16 : i32
    %c0_i32_10 = arith.constant 0 : i32
    %32 = arith.cmpi eq, %c16_i32, %c0_i32_10 : i32
    %c1_i32_11 = arith.constant 1 : i32
    %33 = arith.select %32, %c1_i32_11, %c16_i32 : i32
    %34 = vector.broadcast %33 : i32 to vector<32x1xi32>
    %35 = arith.remsi %13, %34 : vector<32x1xi32>
    %c0_i32_12 = arith.constant 0 : i32
    %36 = vector.broadcast %c0_i32_12 : i32 to vector<32x1xi32>
    %37 = arith.cmpi ne, %35, %36 : vector<32x1xi32>
    %c0_i32_13 = arith.constant 0 : i32
    %38 = vector.broadcast %c0_i32_13 : i32 to vector<32x1xi32>
    %39 = arith.cmpi slt, %35, %38 : vector<32x1xi32>
    %c0_i32_14 = arith.constant 0 : i32
    %40 = arith.cmpi slt, %33, %c0_i32_14 : i32
    %41 = vector.broadcast %40 : i1 to vector<32x1xi1>
    %42 = vector.broadcast %41 : vector<32x1xi1> to vector<32x1xi1>
    %43 = arith.xori %39, %42 : vector<32x1xi1>
    %44 = arith.andi %43, %37 : vector<32x1xi1>
    %45 = vector.broadcast %33 : i32 to vector<32x1xi32>
    %46 = arith.addi %35, %45 : vector<32x1xi32>
    %47 = arith.select %44, %46, %35 : vector<32x1xi1>, vector<32x1xi32>
    %c4_i32_15 = arith.constant 4 : i32
    %48 = vector.broadcast %c4_i32_15 : i32 to vector<32x1xi32>
    %49 = arith.cmpi slt, %47, %48 : vector<32x1xi32>
    %50 = arith.ori %31, %49 : vector<32x1xi1>
    %cst_16 = arith.constant 0.000000e+00 : bf16
    %51 = vector.broadcast %cst_16 : bf16 to vector<5x16xbf16>
    %52 = vector.extract_strided_slice %12 {offsets = [0, 0], sizes = [27, 16], strides = [1, 1]} : vector<32x16xbf16> to vector<27x16xbf16>
    %53 = tpu.concatenate %51, %52 in 0 : vector<5x16xbf16>, vector<27x16xbf16> -> vector<32x16xbf16>
    %cst_17 = arith.constant 0.000000e+00 : bf16
    %54 = vector.broadcast %cst_17 : bf16 to vector<32x16xbf16>
    %55 = vector.shape_cast %50 : vector<32x1xi1> to vector<32x1xi1>
    %56 = vector.broadcast %55 : vector<32x1xi1> to vector<32x16xi1>
    %57 = arith.select %56, %54, %53 : vector<32x16xi1>, vector<32x16xbf16>
    %cst_18 = arith.constant 0.000000e+00 : bf16
    %58 = vector.broadcast %cst_18 : bf16 to vector<4x16xbf16>
    %59 = vector.extract_strided_slice %11 {offsets = [0, 0], sizes = [28, 16], strides = [1, 1]} : vector<32x16xbf16> to vector<28x16xbf16>
    %60 = tpu.concatenate %58, %59 in 0 : vector<4x16xbf16>, vector<28x16xbf16> -> vector<32x16xbf16>
    %cst_19 = arith.constant 0.000000e+00 : bf16
    %61 = vector.broadcast %cst_19 : bf16 to vector<32x16xbf16>
    %62 = vector.shape_cast %49 : vector<32x1xi1> to vector<32x1xi1>
    %63 = vector.broadcast %62 : vector<32x1xi1> to vector<32x16xi1>
    %64 = arith.select %63, %61, %60 : vector<32x16xi1>, vector<32x16xbf16>
    %cst_20 = arith.constant 0.000000e+00 : bf16
    %65 = vector.broadcast %cst_20 : bf16 to vector<4x16xbf16>
    %66 = vector.extract_strided_slice %12 {offsets = [0, 0], sizes = [28, 16], strides = [1, 1]} : vector<32x16xbf16> to vector<28x16xbf16>
    %67 = tpu.concatenate %65, %66 in 0 : vector<4x16xbf16>, vector<28x16xbf16> -> vector<32x16xbf16>
    %cst_21 = arith.constant 0.000000e+00 : bf16
    %68 = vector.broadcast %cst_21 : bf16 to vector<32x16xbf16>
    %69 = vector.shape_cast %49 : vector<32x1xi1> to vector<32x1xi1>
    %70 = vector.broadcast %69 : vector<32x1xi1> to vector<32x16xi1>
    %71 = arith.select %70, %68, %67 : vector<32x16xi1>, vector<32x16xbf16>
    %cst_22 = arith.constant 0.000000e+00 : bf16
    %72 = vector.broadcast %cst_22 : bf16 to vector<1x16xbf16>
    %73 = vector.extract_strided_slice %10 {offsets = [0, 0], sizes = [31, 16], strides = [1, 1]} : vector<32x16xbf16> to vector<31x16xbf16>
    %74 = tpu.concatenate %72, %73 in 0 : vector<1x16xbf16>, vector<31x16xbf16> -> vector<32x16xbf16>
    %cst_23 = arith.constant 0.000000e+00 : bf16
    %75 = vector.broadcast %cst_23 : bf16 to vector<32x16xbf16>
    %76 = vector.shape_cast %31 : vector<32x1xi1> to vector<32x1xi1>
    %77 = vector.broadcast %76 : vector<32x1xi1> to vector<32x16xi1>
    %78 = arith.select %77, %75, %74 : vector<32x16xi1>, vector<32x16xbf16>
    %cst_24 = arith.constant 0.000000e+00 : bf16
    %79 = vector.broadcast %cst_24 : bf16 to vector<1x16xbf16>
    %80 = vector.extract_strided_slice %12 {offsets = [0, 0], sizes = [31, 16], strides = [1, 1]} : vector<32x16xbf16> to vector<31x16xbf16>
    %81 = tpu.concatenate %79, %80 in 0 : vector<1x16xbf16>, vector<31x16xbf16> -> vector<32x16xbf16>
    %cst_25 = arith.constant 0.000000e+00 : bf16
    %82 = vector.broadcast %cst_25 : bf16 to vector<32x16xbf16>
    %83 = vector.shape_cast %31 : vector<32x1xi1> to vector<32x1xi1>
    %84 = vector.broadcast %83 : vector<32x1xi1> to vector<32x16xi1>
    %85 = arith.select %84, %82, %81 : vector<32x16xi1>, vector<32x16xbf16>
    %86 = tpu.concatenate %57, %64, %71, %78, %9, %10, %85, %11, %12 in 1 : vector<32x16xbf16>, vector<32x16xbf16>, vector<32x16xbf16>, vector<32x16xbf16>, vector<32x16xbf16>, vector<32x16xbf16>, vector<32x16xbf16>, vector<32x16xbf16>, vector<32x16xbf16> -> vector<32x144xbf16>
    %c0_26 = arith.constant 0 : index
    %c0_27 = arith.constant 0 : index
    %87 = vector.load %arg3[%c0_26, %c0_27] : memref<144x32xbf16, #tpu.memory_space<vmem>>, vector<144x32xbf16>
    %cst_28 = arith.constant dense<0.000000e+00> : vector<32x32xf32>
    %88 = tpu.matmul %86, %87, %cst_28 {dimension_numbers = #tpu.dot_dimension_numbers<[1], [0], [0], [1], [0, 0, 1, 1], [], []>} : vector<32x144xbf16>, vector<144x32xbf16>, vector<32x32xf32> -> vector<32x32xf32>
    %c0_29 = arith.constant 0 : index
    %c0_30 = arith.constant 0 : index
    %89 = vector.load %arg4[%c0_29, %c0_30] : memref<1x32xf32, #tpu.memory_space<vmem>>, vector<1x32xf32>
    %90 = vector.broadcast %89 : vector<1x32xf32> to vector<32x32xf32>
    %91 = arith.addf %88, %90 : vector<32x32xf32>
    %cst_31 = arith.constant 0.000000e+00 : f32
    %92 = vector.broadcast %cst_31 : f32 to vector<32x32xf32>
    %93 = arith.maximumf %91, %92 : vector<32x32xf32>
    %94 = arith.truncf %93 : vector<32x32xf32> to vector<32x32xbf16>
    %95 = vector.shape_cast %94 : vector<32x32xbf16> to vector<2x16x32xbf16>
    %96 = vector.extract_strided_slice %95 {offsets = [0, 0, 0], sizes = [2, 1, 32], strides = [1, 1, 1]} : vector<2x16x32xbf16> to vector<2x1x32xbf16>
    %97 = vector.shape_cast %96 : vector<2x1x32xbf16> to vector<2x32xbf16>
    %98 = vector.extract_strided_slice %95 {offsets = [0, 1, 0], sizes = [2, 1, 32], strides = [1, 1, 1]} : vector<2x16x32xbf16> to vector<2x1x32xbf16>
    %99 = vector.shape_cast %98 : vector<2x1x32xbf16> to vector<2x32xbf16>
    %100 = vector.extract_strided_slice %95 {offsets = [0, 2, 0], sizes = [2, 1, 32], strides = [1, 1, 1]} : vector<2x16x32xbf16> to vector<2x1x32xbf16>
    %101 = vector.shape_cast %100 : vector<2x1x32xbf16> to vector<2x32xbf16>
    %102 = vector.extract_strided_slice %95 {offsets = [0, 3, 0], sizes = [2, 1, 32], strides = [1, 1, 1]} : vector<2x16x32xbf16> to vector<2x1x32xbf16>
    %103 = vector.shape_cast %102 : vector<2x1x32xbf16> to vector<2x32xbf16>
    %104 = vector.extract_strided_slice %95 {offsets = [0, 4, 0], sizes = [2, 1, 32], strides = [1, 1, 1]} : vector<2x16x32xbf16> to vector<2x1x32xbf16>
    %105 = vector.shape_cast %104 : vector<2x1x32xbf16> to vector<2x32xbf16>
    %106 = vector.extract_strided_slice %95 {offsets = [0, 5, 0], sizes = [2, 1, 32], strides = [1, 1, 1]} : vector<2x16x32xbf16> to vector<2x1x32xbf16>
    %107 = vector.shape_cast %106 : vector<2x1x32xbf16> to vector<2x32xbf16>
    %108 = vector.extract_strided_slice %95 {offsets = [0, 6, 0], sizes = [2, 1, 32], strides = [1, 1, 1]} : vector<2x16x32xbf16> to vector<2x1x32xbf16>
    %109 = vector.shape_cast %108 : vector<2x1x32xbf16> to vector<2x32xbf16>
    %110 = vector.extract_strided_slice %95 {offsets = [0, 7, 0], sizes = [2, 1, 32], strides = [1, 1, 1]} : vector<2x16x32xbf16> to vector<2x1x32xbf16>
    %111 = vector.shape_cast %110 : vector<2x1x32xbf16> to vector<2x32xbf16>
    %112 = vector.extract_strided_slice %95 {offsets = [0, 8, 0], sizes = [2, 1, 32], strides = [1, 1, 1]} : vector<2x16x32xbf16> to vector<2x1x32xbf16>
    %113 = vector.shape_cast %112 : vector<2x1x32xbf16> to vector<2x32xbf16>
    %114 = vector.extract_strided_slice %95 {offsets = [0, 9, 0], sizes = [2, 1, 32], strides = [1, 1, 1]} : vector<2x16x32xbf16> to vector<2x1x32xbf16>
    %115 = vector.shape_cast %114 : vector<2x1x32xbf16> to vector<2x32xbf16>
    %116 = vector.extract_strided_slice %95 {offsets = [0, 10, 0], sizes = [2, 1, 32], strides = [1, 1, 1]} : vector<2x16x32xbf16> to vector<2x1x32xbf16>
    %117 = vector.shape_cast %116 : vector<2x1x32xbf16> to vector<2x32xbf16>
    %118 = vector.extract_strided_slice %95 {offsets = [0, 11, 0], sizes = [2, 1, 32], strides = [1, 1, 1]} : vector<2x16x32xbf16> to vector<2x1x32xbf16>
    %119 = vector.shape_cast %118 : vector<2x1x32xbf16> to vector<2x32xbf16>
    %120 = vector.extract_strided_slice %95 {offsets = [0, 12, 0], sizes = [2, 1, 32], strides = [1, 1, 1]} : vector<2x16x32xbf16> to vector<2x1x32xbf16>
    %121 = vector.shape_cast %120 : vector<2x1x32xbf16> to vector<2x32xbf16>
    %122 = vector.extract_strided_slice %95 {offsets = [0, 13, 0], sizes = [2, 1, 32], strides = [1, 1, 1]} : vector<2x16x32xbf16> to vector<2x1x32xbf16>
    %123 = vector.shape_cast %122 : vector<2x1x32xbf16> to vector<2x32xbf16>
    %124 = vector.extract_strided_slice %95 {offsets = [0, 14, 0], sizes = [2, 1, 32], strides = [1, 1, 1]} : vector<2x16x32xbf16> to vector<2x1x32xbf16>
    %125 = vector.shape_cast %124 : vector<2x1x32xbf16> to vector<2x32xbf16>
    %126 = vector.extract_strided_slice %95 {offsets = [0, 15, 0], sizes = [2, 1, 32], strides = [1, 1, 1]} : vector<2x16x32xbf16> to vector<2x1x32xbf16>
    %127 = vector.shape_cast %126 : vector<2x1x32xbf16> to vector<2x32xbf16>
    %128 = tpu.concatenate %97, %99, %101, %103, %105, %107, %109, %111, %113, %115, %117, %119, %121, %123, %125, %127 in 1 : vector<2x32xbf16>, vector<2x32xbf16>, vector<2x32xbf16>, vector<2x32xbf16>, vector<2x32xbf16>, vector<2x32xbf16>, vector<2x32xbf16>, vector<2x32xbf16>, vector<2x32xbf16>, vector<2x32xbf16>, vector<2x32xbf16>, vector<2x32xbf16>, vector<2x32xbf16>, vector<2x32xbf16>, vector<2x32xbf16>, vector<2x32xbf16> -> vector<2x512xbf16>
    %c0_32 = arith.constant 0 : index
    %c0_33 = arith.constant 0 : index
    %129 = vector.load %arg5[%c0_32, %c0_33] : memref<512x256xbf16, #tpu.memory_space<vmem>>, vector<512x256xbf16>
    %cst_34 = arith.constant dense<0.000000e+00> : vector<2x256xf32>
    %130 = tpu.matmul %128, %129, %cst_34 {dimension_numbers = #tpu.dot_dimension_numbers<[1], [0], [0], [1], [0, 0, 1, 1], [], []>} : vector<2x512xbf16>, vector<512x256xbf16>, vector<2x256xf32> -> vector<2x256xf32>
    %c0_35 = arith.constant 0 : index
    %c0_36 = arith.constant 0 : index
    %131 = vector.load %arg6[%c0_35, %c0_36] : memref<1x256xf32, #tpu.memory_space<vmem>>, vector<1x256xf32>
    %132 = vector.broadcast %131 : vector<1x256xf32> to vector<2x256xf32>
    %133 = arith.addf %130, %132 : vector<2x256xf32>
    %c0_37 = arith.constant 0 : index
    %c0_38 = arith.constant 0 : index
    %134 = vector.load %arg7[%c0_37, %c0_38] : memref<2x256xf32, #tpu.memory_space<vmem>>, vector<2x256xf32>
    tpu.vector_store %arg7[%c0_37, %c0_38], %133 {strides = array<i32>} : memref<2x256xf32, #tpu.memory_space<vmem>>, vector<2x256xf32>,
    return
  }
}

</mosaic_0001>

<llo_original>
// kernel: custom_cnn_forward.1
$region0: #{custom_cnn_forward.1}
  #allocation0 [shape = 'u32[]', space=smem, size = 0x4, offset = 0x4, fixed_abs, tag = 'smem constant byte address 0x4 - core index']
  #allocation1 [shape = 'u32[144,128]{1,0:T(1,128)}', space=vmem, size = 0x12000, scoped, tag = 'internal scratch']
  %s0 = inlined_call_operand.vmem [shape: bf16[128,36], index: 0, kind: input, shape index: {}]
  %s1 = inlined_call_operand.vmem [shape: bf16[36,16], index: 1, kind: input, shape index: {}]
  %s2 = inlined_call_operand.vmem [shape: f32[1,16], index: 2, kind: input, shape index: {}]
  %s3 = inlined_call_operand.vmem [shape: bf16[144,32], index: 3, kind: input, shape index: {}]
  %s4 = inlined_call_operand.vmem [shape: f32[1,32], index: 4, kind: input, shape index: {}]
  %s5 = inlined_call_operand.vmem [shape: bf16[512,256], index: 5, kind: input, shape index: {}]
  %s6 = inlined_call_operand.vmem [shape: f32[1,256], index: 6, kind: input, shape index: {}]
  %s7 = inlined_call_operand.hbm [shape: f32[2,256], index: 7, kind: output, shape index: {}]
  %s8 = sld [smem:[#allocation0]]
  $region38: #{custom_cnn_forward.1} parent=0
    _
  %s10 = ssub.s32 1, %s8
  %s11 = scalar_select 0, %s10, %s8
  $region1: #{custom_cnn_forward.1} parent=0
    #allocation2 [shape = 'u8[2048]{0}', space=vmem, size = 0x800, scoped, tag = 'output window, operand 0, single buffered']
    #allocation3 [shape = 's32[1]{0}', space=sflag, size = 0x4, scoped, tag = 'scoped memory for custom_cnn_forward.1']
    %12 = vsyncpa [#allocation3], 0
    // Predicated region
    $region2: #{custom_cnn_forward.1} parent=1 // pred_check
      _
    $region3: #{custom_cnn_forward.1} parent=1 // pred_check_branch
      %14 = sbr.rel (0) target = $region5
    $region4: #{custom_cnn_forward.1} parent=1 // pred_region
      _
    $region5: #{custom_cnn_forward.1} parent=1 // pred_fallthru
      _
    // Predicated region
    $region6: #{custom_cnn_forward.1} parent=1 // pred_check
      _
    $region7: #{custom_cnn_forward.1} parent=1 // pred_check_branch
      %16 = sbr.rel (0) target = $region9
    $region8: #{custom_cnn_forward.1} parent=1 // pred_region
      _
    $region9: #{custom_cnn_forward.1} parent=1 // pred_fallthru
      _
    // Predicated region
    $region10: #{custom_cnn_forward.1} parent=1 // pred_check
      _
    $region11: #{custom_cnn_forward.1} parent=1 // pred_check_branch
      %18 = sbr.rel (0) target = $region13
    $region12: #{custom_cnn_forward.1} parent=1 // pred_region
      _
    $region13: #{custom_cnn_forward.1} parent=1 // pred_fallthru
      _
    // Predicated region
    $region14: #{custom_cnn_forward.1} parent=1 // pred_check
      _
    $region15: #{custom_cnn_forward.1} parent=1 // pred_check_branch
      %20 = sbr.rel (0) target = $region17
    $region16: #{custom_cnn_forward.1} parent=1 // pred_region
      _
    $region17: #{custom_cnn_forward.1} parent=1 // pred_fallthru
      _
    // Predicated region
    $region18: #{custom_cnn_forward.1} parent=1 // pred_check
      _
    $region19: #{custom_cnn_forward.1} parent=1 // pred_check_branch
      %22 = sbr.rel (0) target = $region21
    $region20: #{custom_cnn_forward.1} parent=1 // pred_region
      _
    $region21: #{custom_cnn_forward.1} parent=1 // pred_fallthru
      _
    // Predicated region
    $region22: #{custom_cnn_forward.1} parent=1 // pred_check
      _
    $region23: #{custom_cnn_forward.1} parent=1 // pred_check_branch
      %24 = sbr.rel (0) target = $region25
    $region24: #{custom_cnn_forward.1} parent=1 // pred_region
      _
    $region25: #{custom_cnn_forward.1} parent=1 // pred_fallthru
      _
    // Predicated region
    $region26: #{custom_cnn_forward.1} parent=1 // pred_check
      _
    $region27: #{custom_cnn_forward.1} parent=1 // pred_check_branch
      %26 = sbr.rel (0) target = $region29
    $region28: #{custom_cnn_forward.1} parent=1 // pred_region
      _
    $region29: #{custom_cnn_forward.1} parent=1 // pred_fallthru
      _
    %v30 = vld [vmem:[%s0] sm:$0xf]
    %v31 = vld [vmem:[%s0 + $0x4] sm:$0xf]
    %v32 = vld [vmem:[%s0 + $0x8] sm:$0xf]
    %v33 = vld [vmem:[%s0 + $0xc] sm:$0xf]
    %v34 = vld [vmem:[%s0 + $0x10] sm:$0xf]
    %v35 = vld [vmem:[%s0 + $0x14] sm:$0xf]
    %v36 = vld [vmem:[%s0 + $0x18] sm:$0xf]
    %v37 = vld [vmem:[%s0 + $0x1c] sm:$0xf]
    %v38 = vld [vmem:[%s0 + $0x20] sm:$0xf]
    %v39 = vld [vmem:[%s0 + $0x24] sm:$0xf]
    %v40 = vld [vmem:[%s0 + $0x28] sm:$0xf]
    %v41 = vld [vmem:[%s0 + $0x2c] sm:$0xf]
    %v42 = vld [vmem:[%s0 + $0x30] sm:$0xf]
    %v43 = vld [vmem:[%s0 + $0x34] sm:$0xf]
    %v44 = vld [vmem:[%s0 + $0x38] sm:$0xf]
    %v45 = vld [vmem:[%s0 + $0x3c] sm:$0xf]
    %v46 = vld [vmem:[%s1] sm:$0xf]
    %v47 = vld [vmem:[%s1 + $0x4] sm:$0xf]
    %v48 = vld [vmem:[%s1 + $0x8] sm:$0xf]
    %v49 = vld [vmem:[%s1 + $0xc] sm:$0xf]
    %v50 = vld [vmem:[%s1 + $0x10] sm:$0x3]
    %v51 = vld [vmem:[%s2] sm:$0x1]
    %v53 = vlaneseq
    %v54 = vshrl.u32 %v53, 7
    %v55 = vsub.s32 0, %v54
    %v56 = vrot.slane %v51, %v55
    %v74 = vunpack.c.l.b16 %v30
    %v75 = vunpack.c.l.b16 %v31
    %v76 = vunpack.c.l.b16 %v32
    %v77 = vunpack.c.l.b16 %v33
    %v78 = vunpack.c.l.b16 %v34
    %v79 = vunpack.c.l.b16 %v35
    %v80 = vunpack.c.l.b16 %v36
    %v81 = vunpack.c.l.b16 %v37
    %v82 = vunpack.c.l.b16 %v38
    %v83 = vunpack.c.l.b16 %v39
    %v84 = vunpack.c.l.b16 %v40
    %v85 = vunpack.c.l.b16 %v41
    %v86 = vunpack.c.l.b16 %v42
    %v87 = vunpack.c.l.b16 %v43
    %v88 = vunpack.c.l.b16 %v44
    %v89 = vunpack.c.l.b16 %v45
    %v90 = vpack.c.b16 %v75, %v74
    %v91 = vpack.c.b16 %v77, %v76
    %v92 = vpack.c.b16 %v79, %v78
    %v93 = vpack.c.b16 %v81, %v80
    %v94 = vpack.c.b16 %v83, %v82
    %v95 = vpack.c.b16 %v85, %v84
    %v96 = vpack.c.b16 %v87, %v86
    %v97 = vpack.c.b16 %v89, %v88
    %v103 = vunpack.c.l.b16 %v46
    %v104 = vunpack.c.l.b16 %v47
    %v105 = vunpack.c.l.b16 %v48
    %v106 = vunpack.c.l.b16 %v49
    %v107 = vunpack.c.l.b16 %v50
    %v108 = vpack.c.b16 %v104, %v103
    %v109 = vpack.c.b16 %v106, %v105
    %v110 = vpack.c.b16 %v107, %v107
    %vm113 = vcmask 293888
    %v115 = vsel %vm113, %v90, 0
    %v118 = vsel %vm113, %v91, 0
    %v121 = vsel %vm113, %v92, 0
    %v124 = vsel %vm113, %v93, 0
    %v127 = vsel %vm113, %v94, 0
    %v130 = vsel %vm113, %v95, 0
    %v133 = vsel %vm113, %v96, 0
    %v136 = vsel %vm113, %v97, 0
    %vm138 = vcmask 1041408
    %v140 = vsel %vm138, %v110, 0
    %142 = vmatprep.subr.bf16.mxu0 0
    %143 = vmatpush1.bf16.msra.mxu0 %v108
    %144 = vmatprep.subr.bf16.mxu0 0
    %145 = vmatpush1.bf16.msra.mxu0 %v109
    %146 = vmatprep.subr.bf16.mxu0 0
    %147 = vmatpush1.bf16.msra.mxu0 %v140
    %148 = vmatprep.subr.bf16.mxu0 0
    %149 = vmatpush1.bf16.msra.mxu0 0
    %150 = vmatprep.subr.bf16.mxu0 0
    %151 = vmatpush1.bf16.msra.mxu0 0
    %152 = vmatprep.subr.bf16.mxu0 0
    %153 = vmatpush1.bf16.msra.mxu0 0
    %154 = vmatprep.subr.bf16.mxu0 0
    %155 = vmatpush1.bf16.msra.mxu0 0
    %156 = vmatprep.subr.bf16.mxu0 0
    %157 = vmatpush1.bf16.msra.mxu0 0
    %158 = vmatprep.subr.bf16.mxu0 0
    %159 = vmatpush1.bf16.msra.mxu0 0
    %160 = vmatprep.subr.bf16.mxu0 0
    %161 = vmatpush1.bf16.msra.mxu0 0
    %162 = vmatprep.subr.bf16.mxu0 0
    %163 = vmatpush1.bf16.msra.mxu0 0
    %164 = vmatprep.subr.bf16.mxu0 0
    %165 = vmatpush1.bf16.msra.mxu0 0
    %166 = vmatprep.subr.bf16.mxu0 0
    %167 = vmatpush1.bf16.msra.mxu0 0
    %168 = vmatprep.subr.bf16.mxu0 0
    %169 = vmatpush1.bf16.msra.mxu0 0
    %170 = vmatprep.subr.bf16.mxu0 0
    %171 = vmatpush1.bf16.msra.mxu0 0
    %172 = vmatprep.subr.bf16.mxu0 0
    %173 = vmatpush1.bf16.msra.mxu0 0
    %174 = vmatprep.mubr.bf16.mxu0 0
    %175 = vmatmul.mubr.bf16.gmra.mrb[0].mxu0 %v115
    %v176 = vpop.f32.mrb[0].mxu0
    %v177 = vadd.f32 %v56, %v176
    %v178 = vpop.f32.mrb[0].mxu0
    %v179 = vpop.f32.mrb[0].mxu0
    %v180 = vadd.f32 %v56, %v179
    %v181 = vpop.f32.mrb[0].mxu0
    %182 = vmatprep.mubr.bf16.mxu0 0
    %183 = vmatmul.mubr.bf16.gmra.mrb[0].mxu0 %v118
    %v184 = vpop.f32.mrb[0].mxu0
    %v185 = vadd.f32 %v56, %v184
    %v186 = vpop.f32.mrb[0].mxu0
    %v187 = vpop.f32.mrb[0].mxu0
    %v188 = vadd.f32 %v56, %v187
    %v189 = vpop.f32.mrb[0].mxu0
    %190 = vmatprep.mubr.bf16.mxu0 0
    %191 = vmatmul.mubr.bf16.gmra.mrb[0].mxu0 %v121
    %v192 = vpop.f32.mrb[0].mxu0
    %v193 = vadd.f32 %v56, %v192
    %v194 = vpop.f32.mrb[0].mxu0
    %v195 = vpop.f32.mrb[0].mxu0
    %v196 = vadd.f32 %v56, %v195
    %v197 = vpop.f32.mrb[0].mxu0
    %198 = vmatprep.mubr.bf16.mxu0 0
    %199 = vmatmul.mubr.bf16.gmra.mrb[0].mxu0 %v124
    %v200 = vpop.f32.mrb[0].mxu0
    %v201 = vadd.f32 %v56, %v200
    %v202 = vpop.f32.mrb[0].mxu0
    %v203 = vpop.f32.mrb[0].mxu0
    %v204 = vadd.f32 %v56, %v203
    %v205 = vpop.f32.mrb[0].mxu0
    %206 = vmatprep.mubr.bf16.mxu0 0
    %207 = vmatmul.mubr.bf16.gmra.mrb[0].mxu0 %v127
    %v208 = vpop.f32.mrb[0].mxu0
    %v209 = vadd.f32 %v56, %v208
    %v210 = vpop.f32.mrb[0].mxu0
    %v211 = vpop.f32.mrb[0].mxu0
    %v212 = vadd.f32 %v56, %v211
    %v213 = vpop.f32.mrb[0].mxu0
    %214 = vmatprep.mubr.bf16.mxu0 0
    %215 = vmatmul.mubr.bf16.gmra.mrb[0].mxu0 %v130
    %v216 = vpop.f32.mrb[0].mxu0
    %v217 = vadd.f32 %v56, %v216
    %v218 = vpop.f32.mrb[0].mxu0
    %v219 = vpop.f32.mrb[0].mxu0
    %v220 = vadd.f32 %v56, %v219
    %v221 = vpop.f32.mrb[0].mxu0
    %222 = vmatprep.mubr.bf16.mxu0 0
    %223 = vmatmul.mubr.bf16.gmra.mrb[0].mxu0 %v133
    %v224 = vpop.f32.mrb[0].mxu0
    %v225 = vadd.f32 %v56, %v224
    %v226 = vpop.f32.mrb[0].mxu0
    %v227 = vpop.f32.mrb[0].mxu0
    %v228 = vadd.f32 %v56, %v227
    %v229 = vpop.f32.mrb[0].mxu0
    %230 = vmatprep.mubr.bf16.mxu0 0
    %231 = vmatmul.mubr.bf16.gmra.mrb[0].mxu0 %v136
    %v232 = vpop.f32.mrb[0].mxu0
    %v233 = vadd.f32 %v56, %v232
    %v234 = vpop.f32.mrb[0].mxu0
    %v235 = vpop.f32.mrb[0].mxu0
    %v236 = vadd.f32 %v56, %v235
    %v237 = vpop.f32.mrb[0].mxu0
    %238 = vdwg.mxu0
    %v239 = vmax.f32 %v177, 0.0
    %v240 = vmax.f32 %v180, 0.0
    %v241 = vmax.f32 %v185, 0.0
    %v242 = vmax.f32 %v188, 0.0
    %v243 = vmax.f32 %v193, 0.0
    %v244 = vmax.f32 %v196, 0.0
    %v245 = vmax.f32 %v201, 0.0
    %v246 = vmax.f32 %v204, 0.0
    %v247 = vmax.f32 %v209, 0.0
    %v248 = vmax.f32 %v212, 0.0
    %v249 = vmax.f32 %v217, 0.0
    %v250 = vmax.f32 %v220, 0.0
    %v251 = vmax.f32 %v225, 0.0
    %v252 = vmax.f32 %v228, 0.0
    %v253 = vmax.f32 %v233, 0.0
    %v254 = vmax.f32 %v236, 0.0
    %v255 = vpack.c.bf16 %v240, %v239
    %v256 = vpack.c.bf16 %v242, %v241
    %v257 = vpack.c.bf16 %v244, %v243
    %v258 = vpack.c.bf16 %v246, %v245
    %v259 = vpack.c.bf16 %v248, %v247
    %v260 = vpack.c.bf16 %v250, %v249
    %v261 = vpack.c.bf16 %v252, %v251
    %v262 = vpack.c.bf16 %v254, %v253
    %v263 = vlaneseq
    %v264 = vshrl.u32 %v263, 7
    %v265 = vadd.s32 %v264, 8
    %v266 = vadd.s32 %v264, 16
    %v267 = vadd.s32 %v264, 24
    %vm268 = vcmp.lt.s32.totalorder %v264, 0
    %v269 = vsub.s32 0, %v264
    %v270 = vsel %vm268, %v269, %v264
    %v271 = vshrl.u32 %v270, 2
    %v272 = vand.u32 %v270, 3
    %v273 = vsub.s32 0, %v272
    %v274 = vsel %vm268, %v273, %v272
    %vm275 = vcmp.lt.s32.totalorder %v265, 0
    %v276 = vsub.s32 0, %v265
    %v277 = vsel %vm275, %v276, %v265
    %v278 = vshrl.u32 %v277, 2
    %v279 = vand.u32 %v277, 3
    %v280 = vsub.s32 0, %v279
    %v281 = vsel %vm275, %v280, %v279
    %vm282 = vcmp.lt.s32.totalorder %v266, 0
    %v283 = vsub.s32 0, %v266
    %v284 = vsel %vm282, %v283, %v266
    %v285 = vshrl.u32 %v284, 2
    %v286 = vand.u32 %v284, 3
    %v287 = vsub.s32 0, %v286
    %v288 = vsel %vm282, %v287, %v286
    %vm289 = vcmp.lt.s32.totalorder %v267, 0
    %v290 = vsub.s32 0, %v267
    %v291 = vsel %vm289, %v290, %v267
    %v292 = vshrl.u32 %v291, 2
    %v293 = vand.u32 %v291, 3
    %v294 = vsub.s32 0, %v293
    %v295 = vsel %vm289, %v294, %v293
    %vm296 = vcmp.ne.s32.totalorder %v274, 0
    %vm297 = vcmp.ne.s32.totalorder %v281, 0
    %vm298 = vcmp.ne.s32.totalorder %v288, 0
    %vm299 = vcmp.ne.s32.totalorder %v295, 0
    %vm300 = vcmp.lt.s32.totalorder %v274, 0
    %vm301 = vcmp.lt.s32.totalorder %v281, 0
    %vm302 = vcmp.lt.s32.totalorder %v288, 0
    %vm303 = vcmp.lt.s32.totalorder %v295, 0
    %vm304 = vmand %vm300, %vm296
    %vm305 = vmand %vm301, %vm297
    %vm306 = vmand %vm302, %vm298
    %vm307 = vmand %vm303, %vm299
    %v308 = vadd.s32 %v274, 4
    %v309 = vadd.s32 %v281, 4
    %v310 = vadd.s32 %v288, 4
    %v311 = vadd.s32 %v295, 4
    %v312 = vsel %vm304, %v308, %v274
    %v313 = vsel %vm305, %v309, %v281
    %v314 = vsel %vm306, %v310, %v288
    %v315 = vsel %vm307, %v311, %v295
    %vm316 = vcmp.eq.s32.totalorder %v312, 0
    %vm317 = vcmp.eq.s32.totalorder %v313, 0
    %vm318 = vcmp.eq.s32.totalorder %v314, 0
    %vm319 = vcmp.eq.s32.totalorder %v315, 0
    %vm320 = vcmp.lt.s32.totalorder %v264, 0
    %v321 = vsub.s32 0, %v264
    %v322 = vsel %vm320, %v321, %v264
    %v323 = vshrl.u32 %v322, 4
    %v324 = vand.u32 %v322, 15
    %v325 = vsub.s32 0, %v324
    %v326 = vsel %vm320, %v325, %v324
    %vm327 = vcmp.lt.s32.totalorder %v265, 0
    %v328 = vsub.s32 0, %v265
    %v329 = vsel %vm327, %v328, %v265
    %v330 = vshrl.u32 %v329, 4
    %v331 = vand.u32 %v329, 15
    %v332 = vsub.s32 0, %v331
    %v333 = vsel %vm327, %v332, %v331
    %vm334 = vcmp.lt.s32.totalorder %v266, 0
    %v335 = vsub.s32 0, %v266
    %v336 = vsel %vm334, %v335, %v266
    %v337 = vshrl.u32 %v336, 4
    %v338 = vand.u32 %v336, 15
    %v339 = vsub.s32 0, %v338
    %v340 = vsel %vm334, %v339, %v338
    %vm341 = vcmp.lt.s32.totalorder %v267, 0
    %v342 = vsub.s32 0, %v267
    %v343 = vsel %vm341, %v342, %v267
    %v344 = vshrl.u32 %v343, 4
    %v345 = vand.u32 %v343, 15
    %v346 = vsub.s32 0, %v345
    %v347 = vsel %vm341, %v346, %v345
    %vm348 = vcmp.ne.s32.totalorder %v326, 0
    %vm349 = vcmp.ne.s32.totalorder %v333, 0
    %vm350 = vcmp.ne.s32.totalorder %v340, 0
    %vm351 = vcmp.ne.s32.totalorder %v347, 0
    %vm352 = vcmp.lt.s32.totalorder %v326, 0
    %vm353 = vcmp.lt.s32.totalorder %v333, 0
    %vm354 = vcmp.lt.s32.totalorder %v340, 0
    %vm355 = vcmp.lt.s32.totalorder %v347, 0
    %vm356 = vmand %vm352, %vm348
    %vm357 = vmand %vm353, %vm349
    %vm358 = vmand %vm354, %vm350
    %vm359 = vmand %vm355, %vm351
    %v360 = vadd.s32 %v326, 16
    %v361 = vadd.s32 %v333, 16
    %v362 = vadd.s32 %v340, 16
    %v363 = vadd.s32 %v347, 16
    %v364 = vsel %vm356, %v360, %v326
    %v365 = vsel %vm357, %v361, %v333
    %v366 = vsel %vm358, %v362, %v340
    %v367 = vsel %vm359, %v363, %v347
    %vm368 = vcmp.lt.s32.totalorder %v364, 4
    %vm369 = vcmp.lt.s32.totalorder %v365, 4
    %vm370 = vcmp.lt.s32.totalorder %v366, 4
    %vm371 = vcmp.lt.s32.totalorder %v367, 4
    %vm372 = vmor %vm316, %vm368
    %vm373 = vmor %vm317, %vm369
    %vm374 = vmor %vm318, %vm370
    %vm375 = vmor %vm319, %vm371
    %vm376 = vsmask.f32 2304
    %v378 = vshrl.u32 %v261, 16
    %v380 = vrot.slane %v378, 5
    %v381 = vshll.u32 %v261, 16
    %v383 = vrot.slane %v381, 6
    %v384 = vor.u32 %v380, %v383
    %v386 = vshrl.u32 %v262, 16
    %v388 = vrot.slane %v386, 5
    %v389 = vshll.u32 %v262, 16
    %v391 = vrot.slane %v389, 6
    %v392 = vor.u32 %v388, %v391
    %v393 = vsel %vm376, %v384, %v392
    %vm396 = vcmask 1042432
    %vm397 = vmand %vm396, %vm376
    %v398 = vsel %vm397, 0, %v384
    %v399 = vsel %vm372, 1, 0
    %v400 = vsel %vm373, 1, 0
    %v401 = vsel %vm374, 1, 0
    %v402 = vsel %vm375, 1, 0
    %vm403 = vcmp.eq.s32.totalorder %v399, 1
    %vm404 = vcmp.eq.s32.totalorder %v400, 1
    %vm405 = vcmp.eq.s32.totalorder %v401, 1
    %vm406 = vcmp.eq.s32.totalorder %v402, 1
    %vm407 = vmpackc.low %vm403, %vm403
    %vm408 = vmpackc.low %vm404, %vm404
    %vm409 = vmpackc.low %vm405, %vm405
    %vm410 = vmpackc.low %vm406, %vm406
    %v411 = vsel %vm407, 65537, 0
    %v412 = vsel %vm408, 65537, 0
    %v413 = vsel %vm409, 65537, 0
    %v414 = vsel %vm410, 65537, 0
    %v415 = vunpack.c.l.b16 %v411
    %v416 = vunpack.c.l.b16 %v412
    %v417 = vunpack.c.l.b16 %v413
    %v418 = vunpack.c.l.b16 %v414
    %v419 = vpack.c.b16 %v416, %v415
    %v420 = vpack.c.b16 %v418, %v417
    %vm421 = vcmp.ne.s16.totalorder %v419, 0
    %vm422 = vcmp.ne.s16.totalorder %v420, 0
    %v423 = vsel %vm421, 0, %v398
    %v424 = vsel %vm422, 0, %v393
    %vm427 = vcmask 1041408
    %v428 = vrot.slane %v259, 6
    %v429 = vrot.slane %v260, 6
    %v430 = vsel %vm427, %v428, %v429
    %v434 = vsel %vm138, 0, %v428
    %v436 = vsel %vm368, 1, 0
    %v437 = vsel %vm369, 1, 0
    %v438 = vsel %vm370, 1, 0
    %v439 = vsel %vm371, 1, 0
    %vm440 = vcmp.eq.s32.totalorder %v436, 1
    %vm441 = vcmp.eq.s32.totalorder %v437, 1
    %vm442 = vcmp.eq.s32.totalorder %v438, 1
    %vm443 = vcmp.eq.s32.totalorder %v439, 1
    %vm444 = vmpackc.low %vm440, %vm440
    %vm445 = vmpackc.low %vm441, %vm441
    %vm446 = vmpackc.low %vm442, %vm442
    %vm447 = vmpackc.low %vm443, %vm443
    %v448 = vsel %vm444, 65537, 0
    %v449 = vsel %vm445, 65537, 0
    %v450 = vsel %vm446, 65537, 0
    %v451 = vsel %vm447, 65537, 0
    %v452 = vunpack.c.l.b16 %v448
    %v453 = vunpack.c.l.b16 %v449
    %v454 = vunpack.c.l.b16 %v450
    %v455 = vunpack.c.l.b16 %v451
    %v456 = vpack.c.b16 %v453, %v452
    %v457 = vpack.c.b16 %v455, %v454
    %vm458 = vcmp.ne.s16.totalorder %v456, 0
    %vm459 = vcmp.ne.s16.totalorder %v457, 0
    %v460 = vsel %vm458, 0, %v434
    %v461 = vsel %vm459, 0, %v430
    %v464 = vrot.slane %v261, 6
    %v465 = vrot.slane %v262, 6
    %v466 = vsel %vm427, %v464, %v465
    %v469 = vsel %vm138, 0, %v464
    %v471 = vsel %vm458, 0, %v469
    %v472 = vsel %vm459, 0, %v466
    %vm473 = vsmask.f32 256
    %v475 = vshrl.u32 %v257, 16
    %v477 = vrot.slane %v475, 7
    %v478 = vshll.u32 %v257, 16
    %v480 = vor.u32 %v477, %v478
    %v482 = vshrl.u32 %v258, 16
    %v484 = vrot.slane %v482, 7
    %v485 = vshll.u32 %v258, 16
    %v487 = vor.u32 %v484, %v485
    %v488 = vsel %vm473, %v477, %v487
    %vm491 = vcmask 1040384
    %vm492 = vmand %vm491, %vm473
    %v493 = vsel %vm492, 0, %v480
    %v494 = vsel %vm316, 1, 0
    %v495 = vsel %vm317, 1, 0
    %v496 = vsel %vm318, 1, 0
    %v497 = vsel %vm319, 1, 0
    %vm498 = vcmp.eq.s32.totalorder %v494, 1
    %vm499 = vcmp.eq.s32.totalorder %v495, 1
    %vm500 = vcmp.eq.s32.totalorder %v496, 1
    %vm501 = vcmp.eq.s32.totalorder %v497, 1
    %vm502 = vmpackc.low %vm498, %vm498
    %vm503 = vmpackc.low %vm499, %vm499
    %vm504 = vmpackc.low %vm500, %vm500
    %vm505 = vmpackc.low %vm501, %vm501
    %v506 = vsel %vm502, 65537, 0
    %v507 = vsel %vm503, 65537, 0
    %v508 = vsel %vm504, 65537, 0
    %v509 = vsel %vm505, 65537, 0
    %v510 = vunpack.c.l.b16 %v506
    %v511 = vunpack.c.l.b16 %v507
    %v512 = vunpack.c.l.b16 %v508
    %v513 = vunpack.c.l.b16 %v509
    %v514 = vpack.c.b16 %v511, %v510
    %v515 = vpack.c.b16 %v513, %v512
    %vm516 = vcmp.ne.s16.totalorder %v514, 0
    %vm517 = vcmp.ne.s16.totalorder %v515, 0
    %v518 = vsel %vm516, 0, %v493
    %v519 = vsel %vm517, 0, %v488
    %v520 = vrot.slane %v378, 7
    %v521 = vor.u32 %v520, %v381
    %v522 = vrot.slane %v386, 7
    %v523 = vor.u32 %v522, %v389
    %v524 = vsel %vm473, %v520, %v523
    %v527 = vsel %vm492, 0, %v521
    %v528 = vsel %vm516, 0, %v527
    %v529 = vsel %vm517, 0, %v524
    %532 = vrot.lane.b32.xlu0 %v460, 16
    %v533 = vpop.permute.xlu0 %532
    %534 = vrot.lane.b32.xlu0 %v461, 16
    %v535 = vpop.permute.xlu0 %534
    %538 = vrot.lane.b32.xlu0 %v471, 32
    %v539 = vpop.permute.xlu0 %538
    %540 = vrot.lane.b32.xlu0 %v472, 32
    %v541 = vpop.permute.xlu0 %540
    %544 = vrot.lane.b32.xlu0 %v518, 48
    %v545 = vpop.permute.xlu0 %544
    %546 = vrot.lane.b32.xlu0 %v519, 48
    %v547 = vpop.permute.xlu0 %546
    %550 = vrot.lane.b32.xlu0 %v255, 64
    %v551 = vpop.permute.xlu0 %550
    %552 = vrot.lane.b32.xlu0 %v256, 64
    %v553 = vpop.permute.xlu0 %552
    %556 = vrot.lane.b32.xlu0 %v257, 80
    %v557 = vpop.permute.xlu0 %556
    %558 = vrot.lane.b32.xlu0 %v258, 80
    %v559 = vpop.permute.xlu0 %558
    %562 = vrot.lane.b32.xlu0 %v528, 96
    %v563 = vpop.permute.xlu0 %562
    %564 = vrot.lane.b32.xlu0 %v529, 96
    %v565 = vpop.permute.xlu0 %564
    %566 = vrot.lane.b32.xlu0 %v259, 112
    %v567 = vpop.permute.xlu0 %566
    %568 = vrot.lane.b32.xlu0 %v260, 112
    %v569 = vpop.permute.xlu0 %568
    %vm570 = vcmask 130048
    %v573 = vsel %vm570, %v423, %v533
    %v576 = vsel %vm570, %v424, %v535
    %vm577 = vcmask 261120
    %v579 = vsel %vm577, %v573, %v539
    %v581 = vsel %vm577, %v576, %v541
    %vm582 = vcmask 392192
    %v584 = vsel %vm582, %v579, %v545
    %v586 = vsel %vm582, %v581, %v547
    %vm587 = vcmask 523264
    %v589 = vsel %vm587, %v584, %v551
    %v591 = vsel %vm587, %v586, %v553
    %vm592 = vcmask 654336
    %v594 = vsel %vm592, %v589, %v557
    %v596 = vsel %vm592, %v591, %v559
    %vm597 = vcmask 785408
    %v599 = vsel %vm597, %v594, %v563
    %v601 = vsel %vm597, %v596, %v565
    %vm602 = vcmask 916480
    %v604 = vsel %vm602, %v599, %v567
    %v607 = vsel %vm602, %v601, %v569
    %v609 = vld [vmem:[%s3] sm:$0xf]
    %v610 = vld [vmem:[%s3 + $0x4] sm:$0xf]
    %v611 = vld [vmem:[%s3 + $0x8] sm:$0xf]
    %v612 = vld [vmem:[%s3 + $0xc] sm:$0xf]
    %v613 = vld [vmem:[%s3 + $0x10] sm:$0xf]
    %v614 = vld [vmem:[%s3 + $0x14] sm:$0xf]
    %v615 = vld [vmem:[%s3 + $0x18] sm:$0xf]
    %v616 = vld [vmem:[%s3 + $0x1c] sm:$0xf]
    %v617 = vld [vmem:[%s3 + $0x20] sm:$0xf]
    %v618 = vld [vmem:[%s3 + $0x24] sm:$0xf]
    %v619 = vld [vmem:[%s3 + $0x28] sm:$0xf]
    %v620 = vld [vmem:[%s3 + $0x2c] sm:$0xf]
    %v621 = vld [vmem:[%s3 + $0x30] sm:$0xf]
    %v622 = vld [vmem:[%s3 + $0x34] sm:$0xf]
    %v623 = vld [vmem:[%s3 + $0x38] sm:$0xf]
    %v624 = vld [vmem:[%s3 + $0x3c] sm:$0xf]
    %v625 = vld [vmem:[%s3 + $0x40] sm:$0xf]
    %v626 = vld [vmem:[%s3 + $0x44] sm:$0xf]
    %v627 = vld [vmem:[%s4] sm:$0x1]
    %v629 = vlaneseq
    %v630 = vshrl.u32 %v629, 7
    %v631 = vsub.s32 0, %v630
    %v632 = vrot.slane %v627, %v631
    %v652 = vunpack.c.l.b16 %v609
    %v653 = vunpack.c.l.b16 %v610
    %v654 = vunpack.c.l.b16 %v611
    %v655 = vunpack.c.l.b16 %v612
    %v656 = vunpack.c.l.b16 %v613
    %v657 = vunpack.c.l.b16 %v614
    %v658 = vunpack.c.l.b16 %v615
    %v659 = vunpack.c.l.b16 %v616
    %v660 = vunpack.c.l.b16 %v617
    %v661 = vunpack.c.l.b16 %v618
    %v662 = vunpack.c.l.b16 %v619
    %v663 = vunpack.c.l.b16 %v620
    %v664 = vunpack.c.l.b16 %v621
    %v665 = vunpack.c.l.b16 %v622
    %v666 = vunpack.c.l.b16 %v623
    %v667 = vunpack.c.l.b16 %v624
    %v668 = vunpack.c.l.b16 %v625
    %v669 = vunpack.c.l.b16 %v626
    %v670 = vpack.c.b16 %v653, %v652
    %v671 = vpack.c.b16 %v655, %v654
    %v672 = vpack.c.b16 %v657, %v656
    %v673 = vpack.c.b16 %v659, %v658
    %v674 = vpack.c.b16 %v661, %v660
    %v675 = vpack.c.b16 %v663, %v662
    %v676 = vpack.c.b16 %v665, %v664
    %v677 = vpack.c.b16 %v667, %v666
    %v678 = vpack.c.b16 %v669, %v668
    %v688 = vsel %vm570, %v261, 0
    %v690 = vsel %vm570, %v262, 0
    %692 = vmatprep.subr.bf16.mxu0 0
    %693 = vmatpush1.bf16.msra.mxu0 %v670
    %694 = vmatprep.subr.bf16.mxu0 0
    %695 = vmatpush1.bf16.msra.mxu0 %v671
    %696 = vmatprep.subr.bf16.mxu0 0
    %697 = vmatpush1.bf16.msra.mxu0 %v672
    %698 = vmatprep.subr.bf16.mxu0 0
    %699 = vmatpush1.bf16.msra.mxu0 %v673
    %700 = vmatprep.subr.bf16.mxu0 0
    %701 = vmatpush1.bf16.msra.mxu0 %v674
    %702 = vmatprep.subr.bf16.mxu0 0
    %703 = vmatpush1.bf16.msra.mxu0 %v675
    %704 = vmatprep.subr.bf16.mxu0 0
    %705 = vmatpush1.bf16.msra.mxu0 %v676
    %706 = vmatprep.subr.bf16.mxu0 0
    %707 = vmatpush1.bf16.msra.mxu0 %v677
    %708 = vmatprep.subr.bf16.mxu0 0
    %709 = vmatpush1.bf16.msra.mxu0 %v678
    %710 = vmatprep.subr.bf16.mxu0 0
    %711 = vmatpush1.bf16.msra.mxu0 0
    %712 = vmatprep.subr.bf16.mxu0 0
    %713 = vmatpush1.bf16.msra.mxu0 0
    %714 = vmatprep.subr.bf16.mxu0 0
    %715 = vmatpush1.bf16.msra.mxu0 0
    %716 = vmatprep.subr.bf16.mxu0 0
    %717 = vmatpush1.bf16.msra.mxu0 0
    %718 = vmatprep.subr.bf16.mxu0 0
    %719 = vmatpush1.bf16.msra.mxu0 0
    %720 = vmatprep.subr.bf16.mxu0 0
    %721 = vmatpush1.bf16.msra.mxu0 0
    %722 = vmatprep.subr.bf16.mxu0 0
    %723 = vmatpush1.bf16.msra.mxu0 0
    %724 = vmatprep.mubr.bf16.mxu0 %v688
    %725 = vmatmul.mubr.bf16.gmra.mrb[0].mxu0 %v604
    %v726 = vpop.f32.mrb[0].mxu0
    %v727 = vadd.f32 %v632, %v726
    %v728 = vpop.f32.mrb[0].mxu0
    %v729 = vpop.f32.mrb[0].mxu0
    %v730 = vadd.f32 %v632, %v729
    %v731 = vpop.f32.mrb[0].mxu0
    %732 = vmatprep.mubr.bf16.mxu0 %v690
    %733 = vmatmul.mubr.bf16.gmra.mrb[0].mxu0 %v607
    %v734 = vpop.f32.mrb[0].mxu0
    %v735 = vadd.f32 %v632, %v734
    %v736 = vpop.f32.mrb[0].mxu0
    %v737 = vpop.f32.mrb[0].mxu0
    %v738 = vadd.f32 %v632, %v737
    %v739 = vpop.f32.mrb[0].mxu0
    %740 = vdwg.mxu0
    %v741 = vmax.f32 %v727, 0.0
    %v742 = vmax.f32 %v730, 0.0
    %v743 = vmax.f32 %v735, 0.0
    %v744 = vmax.f32 %v738, 0.0
    %v745 = vpack.c.bf16 %v742, %v741
    %v746 = vpack.c.bf16 %v744, %v743
    %v749 = vunpack.c.l.b16 %v745
    %v750 = vunpack.c.l.b16 %v746
    %v751 = vrot.slane %v750, 7
    %vm752 = vcmask 1041409
    %v753 = vsel %vm752, %v751, %v749
    %v754 = vpack.c.b16 %v753, %v753
    %v755 = vrot.slane %v749, 1
    %v756 = vsel %vm752, %v750, %v755
    %v757 = vpack.c.b16 %v756, %v756
    %758 = vrot.lane.b32.xlu0 %v757, 32
    %v759 = vpop.permute.xlu0 %758
    %v760 = vrot.slane %v749, 2
    %v761 = vrot.slane %v750, 1
    %v762 = vsel %vm752, %v761, %v760
    %v763 = vpack.c.b16 %v762, %v762
    %764 = vrot.lane.b32.xlu0 %v763, 64
    %v765 = vpop.permute.xlu0 %764
    %v766 = vrot.slane %v749, 3
    %v767 = vrot.slane %v750, 2
    %v768 = vsel %vm752, %v767, %v766
    %v769 = vpack.c.b16 %v768, %v768
    %770 = vrot.lane.b32.xlu0 %v769, 96
    %v771 = vpop.permute.xlu0 %770
    %v772 = vrot.slane %v749, 4
    %v773 = vrot.slane %v750, 3
    %v774 = vsel %vm752, %v773, %v772
    %v775 = vpack.c.b16 %v774, %v774
    %v776 = vrot.slane %v749, 5
    %v777 = vrot.slane %v750, 4
    %v778 = vsel %vm752, %v777, %v776
    %v779 = vpack.c.b16 %v778, %v778
    %780 = vrot.lane.b32.xlu0 %v779, 32
    %v781 = vpop.permute.xlu0 %780
    %v782 = vrot.slane %v749, 6
    %v783 = vrot.slane %v750, 5
    %v784 = vsel %vm752, %v783, %v782
    %v785 = vpack.c.b16 %v784, %v784
    %786 = vrot.lane.b32.xlu0 %v785, 64
    %v787 = vpop.permute.xlu0 %786
    %v788 = vrot.slane %v749, 7
    %v789 = vrot.slane %v750, 6
    %v790 = vsel %vm752, %v789, %v788
    %v791 = vpack.c.b16 %v790, %v790
    %792 = vrot.lane.b32.xlu0 %v791, 96
    %v793 = vpop.permute.xlu0 %792
    %v794 = vunpack.c.h.b16 %v745
    %v795 = vunpack.c.h.b16 %v746
    %v796 = vrot.slane %v795, 7
    %v797 = vsel %vm752, %v796, %v794
    %v798 = vpack.c.b16 %v797, %v797
    %v799 = vrot.slane %v794, 1
    %v800 = vsel %vm752, %v795, %v799
    %v801 = vpack.c.b16 %v800, %v800
    %802 = vrot.lane.b32.xlu0 %v801, 32
    %v803 = vpop.permute.xlu0 %802
    %v804 = vrot.slane %v794, 2
    %v805 = vrot.slane %v795, 1
    %v806 = vsel %vm752, %v805, %v804
    %v807 = vpack.c.b16 %v806, %v806
    %808 = vrot.lane.b32.xlu0 %v807, 64
    %v809 = vpop.permute.xlu0 %808
    %v810 = vrot.slane %v794, 3
    %v811 = vrot.slane %v795, 2
    %v812 = vsel %vm752, %v811, %v810
    %v813 = vpack.c.b16 %v812, %v812
    %814 = vrot.lane.b32.xlu0 %v813, 96
    %v815 = vpop.permute.xlu0 %814
    %v816 = vrot.slane %v794, 4
    %v817 = vrot.slane %v795, 3
    %v818 = vsel %vm752, %v817, %v816
    %v819 = vpack.c.b16 %v818, %v818
    %v820 = vrot.slane %v794, 5
    %v821 = vrot.slane %v795, 4
    %v822 = vsel %vm752, %v821, %v820
    %v823 = vpack.c.b16 %v822, %v822
    %824 = vrot.lane.b32.xlu0 %v823, 32
    %v825 = vpop.permute.xlu0 %824
    %v826 = vrot.slane %v794, 6
    %v827 = vrot.slane %v795, 5
    %v828 = vsel %vm752, %v827, %v826
    %v829 = vpack.c.b16 %v828, %v828
    %830 = vrot.lane.b32.xlu0 %v829, 64
    %v831 = vpop.permute.xlu0 %830
    %v832 = vrot.slane %v794, 7
    %v833 = vrot.slane %v795, 6
    %v834 = vsel %vm752, %v833, %v832
    %v835 = vpack.c.b16 %v834, %v834
    %836 = vrot.lane.b32.xlu0 %v835, 96
    %v837 = vpop.permute.xlu0 %836
    %v840 = vsel %vm577, %v754, %v759
    %v842 = vsel %vm587, %v840, %v765
    %v844 = vsel %vm597, %v842, %v771
    %v848 = vsel %vm577, %v775, %v781
    %v850 = vsel %vm587, %v848, %v787
    %v852 = vsel %vm597, %v850, %v793
    %v856 = vsel %vm577, %v798, %v803
    %v858 = vsel %vm587, %v856, %v809
    %v860 = vsel %vm597, %v858, %v815
    %v864 = vsel %vm577, %v819, %v825
    %v866 = vsel %vm587, %v864, %v831
    %v868 = vsel %vm597, %v866, %v837
    %v870 = vld [vmem:[%s5] sm:$0xff]
    %v871 = vld [vmem:[%s5 + $0x8] sm:$0xff]
    %v872 = vld [vmem:[%s5 + $0x10] sm:$0xff]
    %v873 = vld [vmem:[%s5 + $0x18] sm:$0xff]
    %v874 = vld [vmem:[%s5 + $0x20] sm:$0xff]
    %v875 = vld [vmem:[%s5 + $0x28] sm:$0xff]
    %v876 = vld [vmem:[%s5 + $0x30] sm:$0xff]
    %v877 = vld [vmem:[%s5 + $0x38] sm:$0xff]
    %v878 = vld [vmem:[%s5 + $0x40] sm:$0xff]
    %v879 = vld [vmem:[%s5 + $0x48] sm:$0xff]
    %v880 = vld [vmem:[%s5 + $0x50] sm:$0xff]
    %v881 = vld [vmem:[%s5 + $0x58] sm:$0xff]
    %v882 = vld [vmem:[%s5 + $0x60] sm:$0xff]
    %v883 = vld [vmem:[%s5 + $0x68] sm:$0xff]
    %v884 = vld [vmem:[%s5 + $0x70] sm:$0xff]
    %v885 = vld [vmem:[%s5 + $0x78] sm:$0xff]
    %v886 = vld [vmem:[%s5 + $0x80] sm:$0xff]
    %v887 = vld [vmem:[%s5 + $0x88] sm:$0xff]
    %v888 = vld [vmem:[%s5 + $0x90] sm:$0xff]
    %v889 = vld [vmem:[%s5 + $0x98] sm:$0xff]
    %v890 = vld [vmem:[%s5 + $0xa0] sm:$0xff]
    %v891 = vld [vmem:[%s5 + $0xa8] sm:$0xff]
    %v892 = vld [vmem:[%s5 + $0xb0] sm:$0xff]
    %v893 = vld [vmem:[%s5 + $0xb8] sm:$0xff]
    %v894 = vld [vmem:[%s5 + $0xc0] sm:$0xff]
    %v895 = vld [vmem:[%s5 + $0xc8] sm:$0xff]
    %v896 = vld [vmem:[%s5 + $0xd0] sm:$0xff]
    %v897 = vld [vmem:[%s5 + $0xd8] sm:$0xff]
    %v898 = vld [vmem:[%s5 + $0xe0] sm:$0xff]
    %v899 = vld [vmem:[%s5 + $0xe8] sm:$0xff]
    %v900 = vld [vmem:[%s5 + $0xf0] sm:$0xff]
    %v901 = vld [vmem:[%s5 + $0xf8] sm:$0xff]
    %v902 = vld [vmem:[%s5 + $0x100] sm:$0xff]
    %v903 = vld [vmem:[%s5 + $0x108] sm:$0xff]
    %v904 = vld [vmem:[%s5 + $0x110] sm:$0xff]
    %v905 = vld [vmem:[%s5 + $0x118] sm:$0xff]
    %v906 = vld [vmem:[%s5 + $0x120] sm:$0xff]
    %v907 = vld [vmem:[%s5 + $0x128] sm:$0xff]
    %v908 = vld [vmem:[%s5 + $0x130] sm:$0xff]
    %v909 = vld [vmem:[%s5 + $0x138] sm:$0xff]
    %v910 = vld [vmem:[%s5 + $0x140] sm:$0xff]
    %v911 = vld [vmem:[%s5 + $0x148] sm:$0xff]
    %v912 = vld [vmem:[%s5 + $0x150] sm:$0xff]
    %v913 = vld [vmem:[%s5 + $0x158] sm:$0xff]
    %v914 = vld [vmem:[%s5 + $0x160] sm:$0xff]
    %v915 = vld [vmem:[%s5 + $0x168] sm:$0xff]
    %v916 = vld [vmem:[%s5 + $0x170] sm:$0xff]
    %v917 = vld [vmem:[%s5 + $0x178] sm:$0xff]
    %v918 = vld [vmem:[%s5 + $0x180] sm:$0xff]
    %v919 = vld [vmem:[%s5 + $0x188] sm:$0xff]
    %v920 = vld [vmem:[%s5 + $0x190] sm:$0xff]
    %v921 = vld [vmem:[%s5 + $0x198] sm:$0xff]
    %v922 = vld [vmem:[%s5 + $0x1a0] sm:$0xff]
    %v923 = vld [vmem:[%s5 + $0x1a8] sm:$0xff]
    %v924 = vld [vmem:[%s5 + $0x1b0] sm:$0xff]
    %v925 = vld [vmem:[%s5 + $0x1b8] sm:$0xff]
    %v926 = vld [vmem:[%s5 + $0x1c0] sm:$0xff]
    %v927 = vld [vmem:[%s5 + $0x1c8] sm:$0xff]
    %v928 = vld [vmem:[%s5 + $0x1d0] sm:$0xff]
    %v929 = vld [vmem:[%s5 + $0x1d8] sm:$0xff]
    %v930 = vld [vmem:[%s5 + $0x1e0] sm:$0xff]
    %v931 = vld [vmem:[%s5 + $0x1e8] sm:$0xff]
    %v932 = vld [vmem:[%s5 + $0x1f0] sm:$0xff]
    %v933 = vld [vmem:[%s5 + $0x1f8] sm:$0xff]
    %v934 = vld [vmem:[%s6] sm:$0x3]
    %v936 = vlaneseq
    %v937 = vshrl.u32 %v936, 7
    %v938 = vsub.s32 0, %v937
    %v939 = vrot.slane %v934, %v938
    %v940 = vlaneseq
    %v941 = vshrl.u32 %v940, 7
    %v942 = vsub.s32 1, %v941
    %v943 = vrot.slane %v934, %v942
    %v1010 = vunpack.c.l.b16 %v870
    %v1011 = vunpack.c.h.b16 %v870
    %v1012 = vunpack.c.l.b16 %v871
    %v1013 = vunpack.c.h.b16 %v871
    %v1014 = vunpack.c.l.b16 %v872
    %v1015 = vunpack.c.h.b16 %v872
    %v1016 = vunpack.c.l.b16 %v873
    %v1017 = vunpack.c.h.b16 %v873
    %v1018 = vunpack.c.l.b16 %v874
    %v1019 = vunpack.c.h.b16 %v874
    %v1020 = vunpack.c.l.b16 %v875
    %v1021 = vunpack.c.h.b16 %v875
    %v1022 = vunpack.c.l.b16 %v876
    %v1023 = vunpack.c.h.b16 %v876
    %v1024 = vunpack.c.l.b16 %v877
    %v1025 = vunpack.c.h.b16 %v877
    %v1026 = vunpack.c.l.b16 %v878
    %v1027 = vunpack.c.h.b16 %v878
    %v1028 = vunpack.c.l.b16 %v879
    %v1029 = vunpack.c.h.b16 %v879
    %v1030 = vunpack.c.l.b16 %v880
    %v1031 = vunpack.c.h.b16 %v880
    %v1032 = vunpack.c.l.b16 %v881
    %v1033 = vunpack.c.h.b16 %v881
    %v1034 = vunpack.c.l.b16 %v882
    %v1035 = vunpack.c.h.b16 %v882
    %v1036 = vunpack.c.l.b16 %v883
    %v1037 = vunpack.c.h.b16 %v883
    %v1038 = vunpack.c.l.b16 %v884
    %v1039 = vunpack.c.h.b16 %v884
    %v1040 = vunpack.c.l.b16 %v885
    %v1041 = vunpack.c.h.b16 %v885
    %v1042 = vunpack.c.l.b16 %v886
    %v1043 = vunpack.c.h.b16 %v886
    %v1044 = vunpack.c.l.b16 %v887
    %v1045 = vunpack.c.h.b16 %v887
    %v1046 = vunpack.c.l.b16 %v888
    %v1047 = vunpack.c.h.b16 %v888
    %v1048 = vunpack.c.l.b16 %v889
    %v1049 = vunpack.c.h.b16 %v889
    %v1050 = vunpack.c.l.b16 %v890
    %v1051 = vunpack.c.h.b16 %v890
    %v1052 = vunpack.c.l.b16 %v891
    %v1053 = vunpack.c.h.b16 %v891
    %v1054 = vunpack.c.l.b16 %v892
    %v1055 = vunpack.c.h.b16 %v892
    %v1056 = vunpack.c.l.b16 %v893
    %v1057 = vunpack.c.h.b16 %v893
    %v1058 = vunpack.c.l.b16 %v894
    %v1059 = vunpack.c.h.b16 %v894
    %v1060 = vunpack.c.l.b16 %v895
    %v1061 = vunpack.c.h.b16 %v895
    %v1062 = vunpack.c.l.b16 %v896
    %v1063 = vunpack.c.h.b16 %v896
    %v1064 = vunpack.c.l.b16 %v897
    %v1065 = vunpack.c.h.b16 %v897
    %v1066 = vunpack.c.l.b16 %v898
    %v1067 = vunpack.c.h.b16 %v898
    %v1068 = vunpack.c.l.b16 %v899
    %v1069 = vunpack.c.h.b16 %v899
    %v1070 = vunpack.c.l.b16 %v900
    %v1071 = vunpack.c.h.b16 %v900
    %v1072 = vunpack.c.l.b16 %v901
    %v1073 = vunpack.c.h.b16 %v901
    %v1074 = vunpack.c.l.b16 %v902
    %v1075 = vunpack.c.h.b16 %v902
    %v1076 = vunpack.c.l.b16 %v903
    %v1077 = vunpack.c.h.b16 %v903
    %v1078 = vunpack.c.l.b16 %v904
    %v1079 = vunpack.c.h.b16 %v904
    %v1080 = vunpack.c.l.b16 %v905
    %v1081 = vunpack.c.h.b16 %v905
    %v1082 = vunpack.c.l.b16 %v906
    %v1083 = vunpack.c.h.b16 %v906
    %v1084 = vunpack.c.l.b16 %v907
    %v1085 = vunpack.c.h.b16 %v907
    %v1086 = vunpack.c.l.b16 %v908
    %v1087 = vunpack.c.h.b16 %v908
    %v1088 = vunpack.c.l.b16 %v909
    %v1089 = vunpack.c.h.b16 %v909
    %v1090 = vunpack.c.l.b16 %v910
    %v1091 = vunpack.c.h.b16 %v910
    %v1092 = vunpack.c.l.b16 %v911
    %v1093 = vunpack.c.h.b16 %v911
    %v1094 = vunpack.c.l.b16 %v912
    %v1095 = vunpack.c.h.b16 %v912
    %v1096 = vunpack.c.l.b16 %v913
    %v1097 = vunpack.c.h.b16 %v913
    %v1098 = vunpack.c.l.b16 %v914
    %v1099 = vunpack.c.h.b16 %v914
    %v1100 = vunpack.c.l.b16 %v915
    %v1101 = vunpack.c.h.b16 %v915
    %v1102 = vunpack.c.l.b16 %v916
    %v1103 = vunpack.c.h.b16 %v916
    %v1104 = vunpack.c.l.b16 %v917
    %v1105 = vunpack.c.h.b16 %v917
    %v1106 = vunpack.c.l.b16 %v918
    %v1107 = vunpack.c.h.b16 %v918
    %v1108 = vunpack.c.l.b16 %v919
    %v1109 = vunpack.c.h.b16 %v919
    %v1110 = vunpack.c.l.b16 %v920
    %v1111 = vunpack.c.h.b16 %v920
    %v1112 = vunpack.c.l.b16 %v921
    %v1113 = vunpack.c.h.b16 %v921
    %v1114 = vunpack.c.l.b16 %v922
    %v1115 = vunpack.c.h.b16 %v922
    %v1116 = vunpack.c.l.b16 %v923
    %v1117 = vunpack.c.h.b16 %v923
    %v1118 = vunpack.c.l.b16 %v924
    %v1119 = vunpack.c.h.b16 %v924
    %v1120 = vunpack.c.l.b16 %v925
    %v1121 = vunpack.c.h.b16 %v925
    %v1122 = vunpack.c.l.b16 %v926
    %v1123 = vunpack.c.h.b16 %v926
    %v1124 = vunpack.c.l.b16 %v927
    %v1125 = vunpack.c.h.b16 %v927
    %v1126 = vunpack.c.l.b16 %v928
    %v1127 = vunpack.c.h.b16 %v928
    %v1128 = vunpack.c.l.b16 %v929
    %v1129 = vunpack.c.h.b16 %v929
    %v1130 = vunpack.c.l.b16 %v930
    %v1131 = vunpack.c.h.b16 %v930
    %v1132 = vunpack.c.l.b16 %v931
    %v1133 = vunpack.c.h.b16 %v931
    %v1134 = vunpack.c.l.b16 %v932
    %v1135 = vunpack.c.h.b16 %v932
    %v1136 = vunpack.c.l.b16 %v933
    %v1137 = vunpack.c.h.b16 %v933
    %v1138 = vpack.c.b16 %v1012, %v1010
    %v1139 = vpack.c.b16 %v1013, %v1011
    %v1140 = vpack.c.b16 %v1016, %v1014
    %v1141 = vpack.c.b16 %v1017, %v1015
    %v1142 = vpack.c.b16 %v1020, %v1018
    %v1143 = vpack.c.b16 %v1021, %v1019
    %v1144 = vpack.c.b16 %v1024, %v1022
    %v1145 = vpack.c.b16 %v1025, %v1023
    %v1146 = vpack.c.b16 %v1028, %v1026
    %v1147 = vpack.c.b16 %v1029, %v1027
    %v1148 = vpack.c.b16 %v1032, %v1030
    %v1149 = vpack.c.b16 %v1033, %v1031
    %v1150 = vpack.c.b16 %v1036, %v1034
    %v1151 = vpack.c.b16 %v1037, %v1035
    %v1152 = vpack.c.b16 %v1040, %v1038
    %v1153 = vpack.c.b16 %v1041, %v1039
    %v1154 = vpack.c.b16 %v1044, %v1042
    %v1155 = vpack.c.b16 %v1045, %v1043
    %v1156 = vpack.c.b16 %v1048, %v1046
    %v1157 = vpack.c.b16 %v1049, %v1047
    %v1158 = vpack.c.b16 %v1052, %v1050
    %v1159 = vpack.c.b16 %v1053, %v1051
    %v1160 = vpack.c.b16 %v1056, %v1054
    %v1161 = vpack.c.b16 %v1057, %v1055
    %v1162 = vpack.c.b16 %v1060, %v1058
    %v1163 = vpack.c.b16 %v1061, %v1059
    %v1164 = vpack.c.b16 %v1064, %v1062
    %v1165 = vpack.c.b16 %v1065, %v1063
    %v1166 = vpack.c.b16 %v1068, %v1066
    %v1167 = vpack.c.b16 %v1069, %v1067
    %v1168 = vpack.c.b16 %v1072, %v1070
    %v1169 = vpack.c.b16 %v1073, %v1071
    %v1170 = vpack.c.b16 %v1076, %v1074
    %v1171 = vpack.c.b16 %v1077, %v1075
    %v1172 = vpack.c.b16 %v1080, %v1078
    %v1173 = vpack.c.b16 %v1081, %v1079
    %v1174 = vpack.c.b16 %v1084, %v1082
    %v1175 = vpack.c.b16 %v1085, %v1083
    %v1176 = vpack.c.b16 %v1088, %v1086
    %v1177 = vpack.c.b16 %v1089, %v1087
    %v1178 = vpack.c.b16 %v1092, %v1090
    %v1179 = vpack.c.b16 %v1093, %v1091
    %v1180 = vpack.c.b16 %v1096, %v1094
    %v1181 = vpack.c.b16 %v1097, %v1095
    %v1182 = vpack.c.b16 %v1100, %v1098
    %v1183 = vpack.c.b16 %v1101, %v1099
    %v1184 = vpack.c.b16 %v1104, %v1102
    %v1185 = vpack.c.b16 %v1105, %v1103
    %v1186 = vpack.c.b16 %v1108, %v1106
    %v1187 = vpack.c.b16 %v1109, %v1107
    %v1188 = vpack.c.b16 %v1112, %v1110
    %v1189 = vpack.c.b16 %v1113, %v1111
    %v1190 = vpack.c.b16 %v1116, %v1114
    %v1191 = vpack.c.b16 %v1117, %v1115
    %v1192 = vpack.c.b16 %v1120, %v1118
    %v1193 = vpack.c.b16 %v1121, %v1119
    %v1194 = vpack.c.b16 %v1124, %v1122
    %v1195 = vpack.c.b16 %v1125, %v1123
    %v1196 = vpack.c.b16 %v1128, %v1126
    %v1197 = vpack.c.b16 %v1129, %v1127
    %v1198 = vpack.c.b16 %v1132, %v1130
    %v1199 = vpack.c.b16 %v1133, %v1131
    %v1200 = vpack.c.b16 %v1136, %v1134
    %v1201 = vpack.c.b16 %v1137, %v1135
    %1266 = vmatprep.subr.bf16.mxu0 %v1139
    %1267 = vmatpush1.bf16.msra.mxu0 %v1138
    %1268 = vmatprep.subr.bf16.mxu0 %v1141
    %1269 = vmatpush1.bf16.msra.mxu0 %v1140
    %1270 = vmatprep.subr.bf16.mxu0 %v1143
    %1271 = vmatpush1.bf16.msra.mxu0 %v1142
    %1272 = vmatprep.subr.bf16.mxu0 %v1145
    %1273 = vmatpush1.bf16.msra.mxu0 %v1144
    %1274 = vmatprep.subr.bf16.mxu0 %v1147
    %1275 = vmatpush1.bf16.msra.mxu0 %v1146
    %1276 = vmatprep.subr.bf16.mxu0 %v1149
    %1277 = vmatpush1.bf16.msra.mxu0 %v1148
    %1278 = vmatprep.subr.bf16.mxu0 %v1151
    %1279 = vmatpush1.bf16.msra.mxu0 %v1150
    %1280 = vmatprep.subr.bf16.mxu0 %v1153
    %1281 = vmatpush1.bf16.msra.mxu0 %v1152
    %1282 = vmatprep.subr.bf16.mxu0 %v1155
    %1283 = vmatpush1.bf16.msra.mxu0 %v1154
    %1284 = vmatprep.subr.bf16.mxu0 %v1157
    %1285 = vmatpush1.bf16.msra.mxu0 %v1156
    %1286 = vmatprep.subr.bf16.mxu0 %v1159
    %1287 = vmatpush1.bf16.msra.mxu0 %v1158
    %1288 = vmatprep.subr.bf16.mxu0 %v1161
    %1289 = vmatpush1.bf16.msra.mxu0 %v1160
    %1290 = vmatprep.subr.bf16.mxu0 %v1163
    %1291 = vmatpush1.bf16.msra.mxu0 %v1162
    %1292 = vmatprep.subr.bf16.mxu0 %v1165
    %1293 = vmatpush1.bf16.msra.mxu0 %v1164
    %1294 = vmatprep.subr.bf16.mxu0 %v1167
    %1295 = vmatpush1.bf16.msra.mxu0 %v1166
    %1296 = vmatprep.subr.bf16.mxu0 %v1169
    %1297 = vmatpush1.bf16.msra.mxu0 %v1168
    %1298 = vmatprep.mubr.bf16.mxu0 %v852
    %1299 = vmatmul.mubr.bf16.gmra.mrb[0].mxu0 %v844
    %v1300 = vpop.f32.mrb[0].mxu0
    %v1301 = vadd.f32 %v939, %v1300
    %v1302 = vpop.f32.mrb[0].mxu0
    %v1303 = vadd.f32 %v943, %v1302
    %v1304 = vpop.f32.mrb[0].mxu0
    %v1305 = vpop.f32.mrb[0].mxu0
    %1306 = vdwg.mxu0
    %1307 = vmatprep.subr.bf16.mxu0 %v1171
    %1308 = vmatpush1.bf16.msra.mxu0 %v1170
    %1309 = vmatprep.subr.bf16.mxu0 %v1173
    %1310 = vmatpush1.bf16.msra.mxu0 %v1172
    %1311 = vmatprep.subr.bf16.mxu0 %v1175
    %1312 = vmatpush1.bf16.msra.mxu0 %v1174
    %1313 = vmatprep.subr.bf16.mxu0 %v1177
    %1314 = vmatpush1.bf16.msra.mxu0 %v1176
    %1315 = vmatprep.subr.bf16.mxu0 %v1179
    %1316 = vmatpush1.bf16.msra.mxu0 %v1178
    %1317 = vmatprep.subr.bf16.mxu0 %v1181
    %1318 = vmatpush1.bf16.msra.mxu0 %v1180
    %1319 = vmatprep.subr.bf16.mxu0 %v1183
    %1320 = vmatpush1.bf16.msra.mxu0 %v1182
    %1321 = vmatprep.subr.bf16.mxu0 %v1185
    %1322 = vmatpush1.bf16.msra.mxu0 %v1184
    %1323 = vmatprep.subr.bf16.mxu0 %v1187
    %1324 = vmatpush1.bf16.msra.mxu0 %v1186
    %1325 = vmatprep.subr.bf16.mxu0 %v1189
    %1326 = vmatpush1.bf16.msra.mxu0 %v1188
    %1327 = vmatprep.subr.bf16.mxu0 %v1191
    %1328 = vmatpush1.bf16.msra.mxu0 %v1190
    %1329 = vmatprep.subr.bf16.mxu0 %v1193
    %1330 = vmatpush1.bf16.msra.mxu0 %v1192
    %1331 = vmatprep.subr.bf16.mxu0 %v1195
    %1332 = vmatpush1.bf16.msra.mxu0 %v1194
    %1333 = vmatprep.subr.bf16.mxu0 %v1197
    %1334 = vmatpush1.bf16.msra.mxu0 %v1196
    %1335 = vmatprep.subr.bf16.mxu0 %v1199
    %1336 = vmatpush1.bf16.msra.mxu0 %v1198
    %1337 = vmatprep.subr.bf16.mxu0 %v1201
    %1338 = vmatpush1.bf16.msra.mxu0 %v1200
    %1339 = vmatprep.mubr.bf16.mxu0 %v868
    %1340 = vmatmul.mubr.bf16.gmra.mrb[0].mxu0 %v860
    %v1341 = vpop.f32.mrb[0].mxu0
    %v1342 = vadd.f32 %v1301, %v1341
    %v1343 = vpop.f32.mrb[0].mxu0
    %v1344 = vadd.f32 %v1303, %v1343
    %v1345 = vpop.f32.mrb[0].mxu0
    %v1346 = vpop.f32.mrb[0].mxu0
    %1347 = vdwg.mxu0
    %v1350 = vcombine.low %v1342, %v1344
    %v1352 = vunpack.c.l.s4 1983009808
    %v1353 = vunpack.c.0.s8 %v1352
    %v1354 = vlaneseq
    %v1355 = vshrl.u32 %v1354, 7
    %v1356 = vsub.s32 %v1353, %v1355
    %v1357 = vrot.slane %v1350, %v1356
    %1359 = vst [vmem:[#allocation2] sm:$0xf] %v1357
    // Predicated region
    $region30: #{custom_cnn_forward.1} parent=1 // pred_check
      _
    $region31: #{custom_cnn_forward.1} parent=1 // pred_check_branch
      %1361 = sbr.rel (0) target = $region33
    $region32: #{custom_cnn_forward.1} parent=1 // pred_region
      %s1363 = ssub.s32 64, 64
      %1364 = vsyncadd [#allocation3], %s1363
      %s1366 = sshll.u32 [#allocation2], 4
      %s1367 = int_to_ptr.vmem [resolvable:$true] %s1366
      %1369 = dma.vmem_to_hbm [thread:$0]  %s1367, 64, %s7, [#allocation3]
    $region33: #{custom_cnn_forward.1} parent=1 // pred_fallthru
      _
    // Predicated region
    $region34: #{custom_cnn_forward.1} parent=1 // pred_check
      _
    $region35: #{custom_cnn_forward.1} parent=1 // pred_check_branch
      %1371 = sbr.rel (0) target = $region37
    $region36: #{custom_cnn_forward.1} parent=1 // pred_region
      %1372 = dma.done [#allocation3], 64
    $region37: #{custom_cnn_forward.1} parent=1 // pred_fallthru
      _
    %1373 = vsyncpa [#allocation3], 1

</llo_original>
